<compile_context>
chip_gen: v7x
topology: tpu7x:2x2x1
jax: 0.10.0
libtpu: 0.0.40
codegen_flags: <defaults>
</compile_context>

<pallas_src>
import jax
import jax.numpy as jnp
from jax.experimental import pallas as pl
from jax.experimental.pallas import tpu as pltpu

LANE = 128       # vreg lane width
SUBLANE = 8      # f32 sublane height
NEG_INF = -1e30  # Python float: softmax mask folded into padded b3 lanes


def _round_up(x, m):
    return ((x + m - 1) // m) * m


# ---------------------------------------------------------------------------
# Kernel: one batch tile of Linear -> ReLU -> Linear -> ReLU -> Linear -> Softmax
# ---------------------------------------------------------------------------
def actor_forward_kernel(x_ref, w1_ref, b1_ref, w2_ref, b2_ref, w3_ref, b3_ref,
                         probs_ref):
    # State arrives un-padded f32 (TB, D_in); cast to bf16 only for the MXU.
    x = x_ref[...].astype(jnp.bfloat16)

    # Layer 1: bf16 operands, f32 accumulate; bias + ReLU in f32.
    h1 = jnp.dot(x, w1_ref[...], preferred_element_type=jnp.float32) + b1_ref[...]
    h1 = jnp.maximum(h1, 0.0)

    # Layer 2.
    h2 = jnp.dot(h1.astype(jnp.bfloat16), w2_ref[...],
                 preferred_element_type=jnp.float32) + b2_ref[...]
    h2 = jnp.maximum(h2, 0.0)

    # Output layer -> logits over 128 padded action lanes. Padded lanes already
    # carry -1e30 (folded into b3), so exp() underflows them to exactly 0.
    logits = jnp.dot(h2.astype(jnp.bfloat16), w3_ref[...],
                     preferred_element_type=jnp.float32) + b3_ref[...]

    # Numerically stable softmax with exact normalization (one divide per row;
    # negligible cost, keeps rows summing to 1 for Categorical downstream).
    m = jnp.max(logits, axis=-1, keepdims=True)
    e = jnp.exp(logits - m)
    inv = 1.0 / jnp.sum(e, axis=-1, keepdims=True)
    probs_ref[...] = (e * inv).astype(probs_ref.dtype)


# ---------------------------------------------------------------------------
# Param prep: pad hidden/action dims to 128 lanes, cast weights to bf16.
# Weights are stored (in_features, out_features) = transpose of nn.Linear.weight.
# The input-feature dim of w1 is left un-padded (K=D_in matmul; tiny).
# b3's padded lanes are set to -1e30 so padded logits never enter the softmax.
# ---------------------------------------------------------------------------
def prepare_params(params):
    def pad2(a, rows, cols, dtype, fill=0.0):
        out = jnp.full((rows, cols), fill, dtype)
        return out.at[:a.shape[0], :a.shape[1]].set(a.astype(dtype))

    d_in, h1 = params["w1"].shape
    _, h2 = params["w2"].shape
    _, a = params["w3"].shape
    h1p, h2p, ap = _round_up(h1, LANE), _round_up(h2, LANE), _round_up(a, LANE)
    return {
        "w1": pad2(params["w1"], d_in, h1p, jnp.bfloat16),
        "b1": pad2(params["b1"], 1, h1p, jnp.float32),
        "w2": pad2(params["w2"], h1p, h2p, jnp.bfloat16),
        "b2": pad2(params["b2"], 1, h2p, jnp.float32),
        "w3": pad2(params["w3"], h2p, ap, jnp.bfloat16),
        "b3": pad2(params["b3"], 1, ap, jnp.float32, fill=NEG_INF),
    }


# ---------------------------------------------------------------------------
# Wrapper: batch-tiled pallas_call
# ---------------------------------------------------------------------------
def actor_forward(state, padded_params, n_actions):
    """state: (B, D_in) f32; padded_params from prepare_params().
    Returns (B, n_actions) f32 action probabilities (rows sum to 1)."""
    B, D = state.shape
    assert padded_params["w1"].shape[0] == D
    H1p = padded_params["w1"].shape[1]
    H2p = padded_params["w2"].shape[1]
    Ap = padded_params["w3"].shape[1]

    # Batch tile: aim for >= 2 grid steps (so the "parallel" batch axis lands
    # on both v7x TensorCores), cap at 512 rows (amortizes ~0.35us/step; VMEM
    # footprint stays ~1-2 MiB, far under any generation's limit). The last
    # block may be ragged; Pallas masks its store, so no round_up(B, TB) waste.
    TB = min(512, max(SUBLANE, _round_up(pl.cdiv(B, 2), SUBLANE)))
    grid = (pl.cdiv(B, TB),)

    flops = 2 * B * (D * H1p + H1p * H2p + H2p * Ap)
    bytes_accessed = (
        B * D * 4                                          # state (f32, un-padded)
        + (D * H1p + H1p * H2p + H2p * Ap) * 2             # bf16 weights
        + (H1p + H2p + Ap) * 4                             # f32 biases
        + B * Ap * 2)                                      # bf16 output slab
    cost = pl.CostEstimate(flops=flops, transcendentals=B * Ap,
                           bytes_accessed=bytes_accessed)

    out = pl.pallas_call(
        actor_forward_kernel,
        out_shape=jax.ShapeDtypeStruct((B, Ap), jnp.bfloat16),  # lane-dense bf16
        grid=grid,
        in_specs=[
            pl.BlockSpec((TB, D), lambda i: (i, 0)),     # state tile (un-padded D)
            pl.BlockSpec((D, H1p), lambda i: (0, 0)),    # w1 (resident)
            pl.BlockSpec((1, H1p), lambda i: (0, 0)),    # b1
            pl.BlockSpec((H1p, H2p), lambda i: (0, 0)),  # w2
            pl.BlockSpec((1, H2p), lambda i: (0, 0)),    # b2
            pl.BlockSpec((H2p, Ap), lambda i: (0, 0)),   # w3
            pl.BlockSpec((1, Ap), lambda i: (0, 0)),     # b3 (mask folded in)
        ],
        out_specs=pl.BlockSpec((TB, Ap), lambda i: (i, 0)),  # lane-dense output
        compiler_params=pltpu.CompilerParams(
            dimension_semantics=("parallel",),           # megacore-shard batch
            vmem_limit_bytes=32 * 1024 * 1024),
        cost_estimate=cost,
    )(state,
      padded_params["w1"], padded_params["b1"],
      padded_params["w2"], padded_params["b2"],
      padded_params["w3"], padded_params["b3"])

    # TODO(synk): for the B~1-8 RL regime, per-call launch + weight DMA dominate;
    # the real lever is fusing actor+critic (or many timesteps) into one call /
    # keeping weights resident across calls, which is outside this module.
    return out[:, :n_actions].astype(jnp.float32)


# ---------------------------------------------------------------------------
# Init + references
# ---------------------------------------------------------------------------
def init_actor_params(key, input_dim, layer1_dim, layer2_dim, n_actions):
    """Deterministic synthetic init (PyTorch-Linear-style uniform bounds)."""
    ks = jax.random.split(key, 6)

    def uniform(k, shape, fan_in):
        bound = 1.0 / jnp.sqrt(jnp.float32(fan_in))
        return jax.random.uniform(k, shape, jnp.float32, -bound, bound)

    return {
        "w1": uniform(ks[0], (input_dim, layer1_dim), input_dim),
        "b1": uniform(ks[1], (1, layer1_dim), input_dim),
        "w2": uniform(ks[2], (layer1_dim, layer2_dim), layer1_dim),
        "b2": uniform(ks[3], (1, layer2_dim), layer1_dim),
        "w3": uniform(ks[4], (layer2_dim, n_actions), layer2_dim),
        "b3": uniform(ks[5], (1, n_actions), layer2_dim),
    }


def actor_forward_ref_f32(state, p):
    """Pure-JAX f32 reference."""
    h1 = jnp.maximum(state @ p["w1"] + p["b1"], 0.0)
    h2 = jnp.maximum(h1 @ p["w2"] + p["b2"], 0.0)
    logits = h2 @ p["w3"] + p["b3"]
    return jax.nn.softmax(logits, axis=-1)


def actor_forward_ref_bf16(state, p):
    """Reference with the kernel's precision (bf16 matmul operands, f32 accum)."""
    bf = jnp.bfloat16
    h1 = jnp.dot(state.astype(bf), p["w1"].astype(bf),
                 preferred_element_type=jnp.float32) + p["b1"]
    h1 = jnp.maximum(h1, 0.0)
    h2 = jnp.dot(h1.astype(bf), p["w2"].astype(bf),
                 preferred_element_type=jnp.float32) + p["b2"]
    h2 = jnp.maximum(h2, 0.0)
    logits = jnp.dot(h2.astype(bf), p["w3"].astype(bf),
                     preferred_element_type=jnp.float32) + p["b3"]
    return jax.nn.softmax(logits, axis=-1)


if __name__ == "__main__":
    # Shapes consistent with ActorNetwork(n_actions, layer_sizes, alpha),
    # e.g. slime-volleyball-ish: 12-d observation, 6 actions, 32-unit layers.
    batch = 8
    input_dim = 12
    layer1_dim = 32
    layer2_dim = 32
    n_actions = 6

    key = jax.random.PRNGKey(0)
    k_params, k_state = jax.random.split(key)

    params = init_actor_params(k_params, input_dim, layer1_dim, layer2_dim,
                               n_actions)
    state = jax.random.normal(k_state, (batch, input_dim), dtype=jnp.float32)

    padded_params = prepare_params(params)
    probs = actor_forward(state, padded_params, n_actions)
    probs = jax.block_until_ready(probs)

    # Correctness: tight vs. a precision-matched (bf16-operand) reference,
    # loose vs. the pure-f32 reference; rows must sum to 1 (bf16 output
    # rounding only).
    ref16 = actor_forward_ref_bf16(state, params)
    ref32 = actor_forward_ref_f32(state, params)
    assert probs.shape == (batch, n_actions)
    assert bool(jnp.all(probs >= 0.0))
    assert jnp.allclose(probs, ref16, atol=1e-2, rtol=1e-2)
    assert jnp.allclose(probs, ref32, atol=5e-2, rtol=5e-2)
    assert jnp.allclose(jnp.sum(probs, axis=-1), 1.0, atol=1e-2)

    # TODO(synk): torch.distributions.Categorical, optim.Adam, save/load have
    # no Pallas equivalent; the kernel returns the distribution's probs.
    print("KERNEL_OK")
</pallas_src>

<mosaic_0001>
module attributes {stable_mosaic.version = 11 : i64} {
  func.func @actor_forward_kernel(%arg0: i32, %arg1: memref<8x12xf32, #tpu.memory_space<vmem>>, %arg2: memref<12x128xbf16, #tpu.memory_space<vmem>>, %arg3: memref<1x128xf32, #tpu.memory_space<vmem>>, %arg4: memref<128x128xbf16, #tpu.memory_space<vmem>>, %arg5: memref<1x128xf32, #tpu.memory_space<vmem>>, %arg6: memref<128x128xbf16, #tpu.memory_space<vmem>>, %arg7: memref<1x128xf32, #tpu.memory_space<vmem>>, %arg8: memref<8x128xbf16, #tpu.memory_space<vmem>>) attributes {dimension_semantics = [#tpu.dimension_semantics<parallel>], iteration_bounds = array<i64: 1>, scalar_prefetch = 0 : i64, scratch_operands = 0 : i64, tpu.core_type = #tpu.core_type<tc>, window_params = [{transform_indices = @transform_0, window_bounds = array<i64: 8, 12>}, {pipeline_mode = #tpu.pipeline_mode<synchronous>, transform_indices = @transform_1, window_bounds = array<i64: 12, 128>}, {pipeline_mode = #tpu.pipeline_mode<synchronous>, transform_indices = @transform_2, window_bounds = array<i64: 1, 128>}, {pipeline_mode = #tpu.pipeline_mode<synchronous>, transform_indices = @transform_3, window_bounds = array<i64: 128, 128>}, {pipeline_mode = #tpu.pipeline_mode<synchronous>, transform_indices = @transform_4, window_bounds = array<i64: 1, 128>}, {pipeline_mode = #tpu.pipeline_mode<synchronous>, transform_indices = @transform_5, window_bounds = array<i64: 128, 128>}, {pipeline_mode = #tpu.pipeline_mode<synchronous>, transform_indices = @transform_6, window_bounds = array<i64: 1, 128>}, {transform_indices = @transform_7, window_bounds = array<i64: 8, 128>}]} {
    %c0 = arith.constant 0 : index
    %c0_0 = arith.constant 0 : index
    %0 = vector.load %arg1[%c0, %c0_0] : memref<8x12xf32, #tpu.memory_space<vmem>>, vector<8x12xf32>
    %1 = arith.truncf %0 : vector<8x12xf32> to vector<8x12xbf16>
    %c0_1 = arith.constant 0 : index
    %c0_2 = arith.constant 0 : index
    %2 = vector.load %arg2[%c0_1, %c0_2] : memref<12x128xbf16, #tpu.memory_space<vmem>>, vector<12x128xbf16>
    %cst = arith.constant dense<0.000000e+00> : vector<8x128xf32>
    %3 = tpu.matmul %1, %2, %cst {dimension_numbers = #tpu.dot_dimension_numbers<[1], [0], [0], [1], [0, 0, 1, 1], [], []>} : vector<8x12xbf16>, vector<12x128xbf16>, vector<8x128xf32> -> vector<8x128xf32>
    %c0_3 = arith.constant 0 : index
    %c0_4 = arith.constant 0 : index
    %4 = vector.load %arg3[%c0_3, %c0_4] : memref<1x128xf32, #tpu.memory_space<vmem>>, vector<1x128xf32>
    %5 = vector.broadcast %4 : vector<1x128xf32> to vector<8x128xf32>
    %6 = arith.addf %3, %5 : vector<8x128xf32>
    %cst_5 = arith.constant 0.000000e+00 : f32
    %7 = vector.broadcast %cst_5 : f32 to vector<8x128xf32>
    %8 = arith.maximumf %6, %7 : vector<8x128xf32>
    %9 = arith.truncf %8 : vector<8x128xf32> to vector<8x128xbf16>
    %c0_6 = arith.constant 0 : index
    %c0_7 = arith.constant 0 : index
    %10 = vector.load %arg4[%c0_6, %c0_7] : memref<128x128xbf16, #tpu.memory_space<vmem>>, vector<128x128xbf16>
    %cst_8 = arith.constant dense<0.000000e+00> : vector<8x128xf32>
    %11 = tpu.matmul %9, %10, %cst_8 {dimension_numbers = #tpu.dot_dimension_numbers<[1], [0], [0], [1], [0, 0, 1, 1], [], []>} : vector<8x128xbf16>, vector<128x128xbf16>, vector<8x128xf32> -> vector<8x128xf32>
    %c0_9 = arith.constant 0 : index
    %c0_10 = arith.constant 0 : index
    %12 = vector.load %arg5[%c0_9, %c0_10] : memref<1x128xf32, #tpu.memory_space<vmem>>, vector<1x128xf32>
    %13 = vector.broadcast %12 : vector<1x128xf32> to vector<8x128xf32>
    %14 = arith.addf %11, %13 : vector<8x128xf32>
    %cst_11 = arith.constant 0.000000e+00 : f32
    %15 = vector.broadcast %cst_11 : f32 to vector<8x128xf32>
    %16 = arith.maximumf %14, %15 : vector<8x128xf32>
    %17 = arith.truncf %16 : vector<8x128xf32> to vector<8x128xbf16>
    %c0_12 = arith.constant 0 : index
    %c0_13 = arith.constant 0 : index
    %18 = vector.load %arg6[%c0_12, %c0_13] : memref<128x128xbf16, #tpu.memory_space<vmem>>, vector<128x128xbf16>
    %cst_14 = arith.constant dense<0.000000e+00> : vector<8x128xf32>
    %19 = tpu.matmul %17, %18, %cst_14 {dimension_numbers = #tpu.dot_dimension_numbers<[1], [0], [0], [1], [0, 0, 1, 1], [], []>} : vector<8x128xbf16>, vector<128x128xbf16>, vector<8x128xf32> -> vector<8x128xf32>
    %c0_15 = arith.constant 0 : index
    %c0_16 = arith.constant 0 : index
    %20 = vector.load %arg7[%c0_15, %c0_16] : memref<1x128xf32, #tpu.memory_space<vmem>>, vector<1x128xf32>
    %21 = vector.broadcast %20 : vector<1x128xf32> to vector<8x128xf32>
    %22 = arith.addf %19, %21 : vector<8x128xf32>
    %cst_17 = arith.constant dense<0xFF800000> : vector<8xf32>
    %23 = vector.multi_reduction <maximumf>, %22, %cst_17 [1] : vector<8x128xf32> to vector<8xf32>
    %24 = vector.shape_cast %23 : vector<8xf32> to vector<8x1xf32>
    %25 = vector.broadcast %24 : vector<8x1xf32> to vector<8x128xf32>
    %26 = arith.subf %22, %25 : vector<8x128xf32>
    %27 = math.exp %26 : vector<8x128xf32>
    %cst_18 = arith.constant dense<0.000000e+00> : vector<8xf32>
    %28 = vector.multi_reduction <add>, %27, %cst_18 [1] : vector<8x128xf32> to vector<8xf32>
    %29 = vector.shape_cast %28 : vector<8xf32> to vector<8x1xf32>
    %cst_19 = arith.constant 1.000000e+00 : f32
    %30 = vector.broadcast %cst_19 : f32 to vector<8x1xf32>
    %31 = arith.divf %30, %29 : vector<8x1xf32>
    %32 = vector.broadcast %31 : vector<8x1xf32> to vector<8x128xf32>
    %33 = arith.mulf %27, %32 : vector<8x128xf32>
    %34 = arith.truncf %33 : vector<8x128xf32> to vector<8x128xbf16>
    %c0_20 = arith.constant 0 : index
    %c0_21 = arith.constant 0 : index
    %35 = vector.load %arg8[%c0_20, %c0_21] : memref<8x128xbf16, #tpu.memory_space<vmem>>, vector<8x128xbf16>
    tpu.vector_store %arg8[%c0_20, %c0_21], %34 {strides = array<i32>} : memref<8x128xbf16, #tpu.memory_space<vmem>>, vector<8x128xbf16>,
    return
  }
  func.func @transform_0(%arg0: i32) -> (i32, i32) {
    %c0_i32 = arith.constant 0 : i32
    %c0_i32_0 = arith.constant 0 : i32
    return %arg0, %c0_i32 : i32, i32
  }
  func.func @transform_1(%arg0: i32) -> (i32, i32) {
    %c0_i32 = arith.constant 0 : i32
    %c0_i32_0 = arith.constant 0 : i32
    %c0_i32_1 = arith.constant 0 : i32
    return %c0_i32, %c0_i32_0 : i32, i32
  }
  func.func @transform_2(%arg0: i32) -> (i32, i32) {
    %c0_i32 = arith.constant 0 : i32
    %c0_i32_0 = arith.constant 0 : i32
    %c0_i32_1 = arith.constant 0 : i32
    return %c0_i32, %c0_i32_0 : i32, i32
  }
  func.func @transform_3(%arg0: i32) -> (i32, i32) {
    %c0_i32 = arith.constant 0 : i32
    %c0_i32_0 = arith.constant 0 : i32
    %c0_i32_1 = arith.constant 0 : i32
    return %c0_i32, %c0_i32_0 : i32, i32
  }
  func.func @transform_4(%arg0: i32) -> (i32, i32) {
    %c0_i32 = arith.constant 0 : i32
    %c0_i32_0 = arith.constant 0 : i32
    %c0_i32_1 = arith.constant 0 : i32
    return %c0_i32, %c0_i32_0 : i32, i32
  }
  func.func @transform_5(%arg0: i32) -> (i32, i32) {
    %c0_i32 = arith.constant 0 : i32
    %c0_i32_0 = arith.constant 0 : i32
    %c0_i32_1 = arith.constant 0 : i32
    return %c0_i32, %c0_i32_0 : i32, i32
  }
  func.func @transform_6(%arg0: i32) -> (i32, i32) {
    %c0_i32 = arith.constant 0 : i32
    %c0_i32_0 = arith.constant 0 : i32
    %c0_i32_1 = arith.constant 0 : i32
    return %c0_i32, %c0_i32_0 : i32, i32
  }
  func.func @transform_7(%arg0: i32) -> (i32, i32) {
    %c0_i32 = arith.constant 0 : i32
    %c0_i32_0 = arith.constant 0 : i32
    return %arg0, %c0_i32 : i32, i32
  }
}

</mosaic_0001>

<llo_original>
// kernel: tpu_custom_call.1
$region0: #{tpu_custom_call.1}
  #allocation0 [shape = 'u32[]', space=smem, size = 0x4, offset = 0x4, fixed_abs, tag = 'smem constant byte address 0x4 - core index']
  #allocation1 [shape = 'u32[144,128]{1,0:T(1,128)}', space=vmem, size = 0x12000, scoped, tag = 'internal scratch']
  %s0 = inlined_call_operand.hbm [shape: f32[8,12], index: 0, kind: input, shape index: {}]
  %s1 = inlined_call_operand.hbm [shape: bf16[12,128], index: 1, kind: input, shape index: {}]
  %s2 = inlined_call_operand.vmem [shape: f32[1,128], index: 2, kind: input, shape index: {}]
  %s3 = inlined_call_operand.hbm [shape: bf16[128,128], index: 3, kind: input, shape index: {}]
  %s4 = inlined_call_operand.vmem [shape: f32[1,128], index: 4, kind: input, shape index: {}]
  %s5 = inlined_call_operand.hbm [shape: bf16[128,128], index: 5, kind: input, shape index: {}]
  %s6 = inlined_call_operand.vmem [shape: f32[1,128], index: 6, kind: input, shape index: {}]
  %s7 = inlined_call_operand.hbm [shape: bf16[8,128], index: 7, kind: output, shape index: {}]
  %s8 = sld [smem:[#allocation0]]
  $region54: #{tpu_custom_call.1} parent=0
    _
  %s10 = ssub.s32 1, %s8
  %s11 = scalar_select 0, %s10, %s8
  $region1: #{tpu_custom_call.1} parent=0
    #allocation2 [shape = 'u8[4096]{0}', space=vmem, size = 0x1000, scoped, tag = 'input window, operand 0, single buffered']
    #allocation3 [shape = 's32[1]{0}', space=sflag, size = 0x4, scoped, tag = 'scoped memory for tpu_custom_call.1']
    #allocation4 [shape = 's32[1]{0}', space=sflag, size = 0x4, scoped, tag = 'scoped memory for tpu_custom_call.1']
    #allocation5 [shape = 'u8[4096]{0}', space=vmem, size = 0x1000, scoped, tag = 'input window, operand 1, single buffered']
    #allocation6 [shape = 's32[1]{0}', space=sflag, size = 0x4, scoped, tag = 'scoped memory for tpu_custom_call.1']
    #allocation7 [shape = 'u8[32768]{0}', space=vmem, size = 0x8000, scoped, tag = 'input window, operand 3, single buffered']
    #allocation8 [shape = 'u8[32768]{0}', space=vmem, size = 0x8000, scoped, tag = 'input window, operand 5, single buffered']
    #allocation9 [shape = 's32[1]{0}', space=sflag, size = 0x4, scoped, tag = 'scoped memory for tpu_custom_call.1']
    #allocation10 [shape = 'u8[2048]{0}', space=vmem, size = 0x800, scoped, tag = 'output window, operand 0, single buffered']
    %12 = vsyncpa [#allocation3], 0
    %13 = vsyncpa [#allocation6], 0
    %14 = vsyncpa [#allocation9], 0
    %15 = vsyncpa [#allocation4], 0
    // Predicated region
    $region2: #{tpu_custom_call.1} parent=1 // pred_check
      _
    $region3: #{tpu_custom_call.1} parent=1 // pred_check_branch
      %17 = sbr.rel (0) target = $region5
    $region4: #{tpu_custom_call.1} parent=1 // pred_region
      %s19 = ssub.s32 128, 128
      %20 = vsyncadd [#allocation3], %s19
      %s22 = sshll.u32 [#allocation2], 4
      %s23 = int_to_ptr.vmem [resolvable:$true] %s22
      %25 = dma.hbm_to_vmem [thread:$0]  %s0, 128, %s23, [#allocation3]
    $region5: #{tpu_custom_call.1} parent=1 // pred_fallthru
      _
    // Predicated region
    $region6: #{tpu_custom_call.1} parent=1 // pred_check
      _
    $region7: #{tpu_custom_call.1} parent=1 // pred_check_branch
      %27 = sbr.rel (0) target = $region9
    $region8: #{tpu_custom_call.1} parent=1 // pred_region
      %s29 = ssub.s32 128, 128
      %30 = vsyncadd [#allocation6], %s29
      %s31 = sshll.u32 [#allocation5], 4
      %s32 = int_to_ptr.vmem [resolvable:$true] %s31
      %37 = dma.hbm_to_vmem [thread:$0]  %s1, 128, %s32, [#allocation6], 64, 64, 4
    $region9: #{tpu_custom_call.1} parent=1 // pred_fallthru
      _
    // Predicated region
    $region10: #{tpu_custom_call.1} parent=1 // pred_check
      _
    $region11: #{tpu_custom_call.1} parent=1 // pred_check_branch
      %39 = sbr.rel (0) target = $region13
    $region12: #{tpu_custom_call.1} parent=1 // pred_region
      _
    $region13: #{tpu_custom_call.1} parent=1 // pred_fallthru
      _
    // Predicated region
    $region14: #{tpu_custom_call.1} parent=1 // pred_check
      _
    $region15: #{tpu_custom_call.1} parent=1 // pred_check_branch
      %41 = sbr.rel (0) target = $region17
    $region16: #{tpu_custom_call.1} parent=1 // pred_region
      %s43 = ssub.s32 1024, 1024
      %44 = vsyncadd [#allocation6], %s43
      %s45 = sshll.u32 [#allocation7], 4
      %s46 = int_to_ptr.vmem [resolvable:$true] %s45
      %51 = dma.hbm_to_vmem [thread:$0]  %s3, 1024, %s46, [#allocation6], 64, 64, 4
    $region17: #{tpu_custom_call.1} parent=1 // pred_fallthru
      _
    // Predicated region
    $region18: #{tpu_custom_call.1} parent=1 // pred_check
      _
    $region19: #{tpu_custom_call.1} parent=1 // pred_check_branch
      %53 = sbr.rel (0) target = $region21
    $region20: #{tpu_custom_call.1} parent=1 // pred_region
      _
    $region21: #{tpu_custom_call.1} parent=1 // pred_fallthru
      _
    // Predicated region
    $region22: #{tpu_custom_call.1} parent=1 // pred_check
      _
    $region23: #{tpu_custom_call.1} parent=1 // pred_check_branch
      %55 = sbr.rel (0) target = $region25
    $region24: #{tpu_custom_call.1} parent=1 // pred_region
      %s57 = ssub.s32 1024, 1024
      %58 = vsyncadd [#allocation9], %s57
      %s59 = sshll.u32 [#allocation8], 4
      %s60 = int_to_ptr.vmem [resolvable:$true] %s59
      %65 = dma.hbm_to_vmem [thread:$0]  %s5, 1024, %s60, [#allocation9], 64, 64, 4
    $region25: #{tpu_custom_call.1} parent=1 // pred_fallthru
      _
    // Predicated region
    $region26: #{tpu_custom_call.1} parent=1 // pred_check
      _
    $region27: #{tpu_custom_call.1} parent=1 // pred_check_branch
      %67 = sbr.rel (0) target = $region29
    $region28: #{tpu_custom_call.1} parent=1 // pred_region
      _
    $region29: #{tpu_custom_call.1} parent=1 // pred_fallthru
      _
    // Predicated region
    $region30: #{tpu_custom_call.1} parent=1 // pred_check
      _
    $region31: #{tpu_custom_call.1} parent=1 // pred_check_branch
      %69 = sbr.rel (0) target = $region33
    $region32: #{tpu_custom_call.1} parent=1 // pred_region
      %70 = dma.done [#allocation3], 128
    $region33: #{tpu_custom_call.1} parent=1 // pred_fallthru
      _
    // Predicated region
    $region34: #{tpu_custom_call.1} parent=1 // pred_check
      _
    $region35: #{tpu_custom_call.1} parent=1 // pred_check_branch
      %72 = sbr.rel (0) target = $region37
    $region36: #{tpu_custom_call.1} parent=1 // pred_region
      %73 = dma.done [#allocation6], 128
    $region37: #{tpu_custom_call.1} parent=1 // pred_fallthru
      _
    // Predicated region
    $region38: #{tpu_custom_call.1} parent=1 // pred_check
      _
    $region39: #{tpu_custom_call.1} parent=1 // pred_check_branch
      %75 = sbr.rel (0) target = $region41
    $region40: #{tpu_custom_call.1} parent=1 // pred_region
      %76 = dma.done [#allocation6], 1024
    $region41: #{tpu_custom_call.1} parent=1 // pred_fallthru
      _
    // Predicated region
    $region42: #{tpu_custom_call.1} parent=1 // pred_check
      _
    $region43: #{tpu_custom_call.1} parent=1 // pred_check_branch
      %78 = sbr.rel (0) target = $region45
    $region44: #{tpu_custom_call.1} parent=1 // pred_region
      %79 = dma.done [#allocation9], 1024
    $region45: #{tpu_custom_call.1} parent=1 // pred_fallthru
      _
    %v81 = vld [vmem:[#allocation2] sm:$0xff]
    %v82 = vpack.c.bf16 %v81, %v81
    %v83 = vld [vmem:[#allocation5] sm:$0xf]
    %v84 = vld [vmem:[#allocation5 + $0x4] sm:$0x3]
    %v85 = vld [vmem:[%s2] sm:$0x1]
    %v87 = vlaneseq
    %v88 = vshrl.u32 %v87, 7
    %v89 = vsub.s32 0, %v88
    %v90 = vrot.slane %v85, %v89
    %v94 = vunpack.c.l.b16 %v83
    %v95 = vunpack.c.l.b16 %v84
    %v96 = vpack.c.b16 %v95, %v94
    %vm97 = vcmask 97280
    %v99 = vsel %vm97, %v82, 0
    %vm101 = vcmask 1045504
    %v103 = vsel %vm101, %v96, 0
    %105 = vmatprep.subr.bf16.mxu0 0
    %106 = vmatpush1.bf16.msra.mxu0 %v103
    %107 = vmatprep.subr.bf16.mxu0 0
    %108 = vmatpush1.bf16.msra.mxu0 0
    %109 = vmatprep.subr.bf16.mxu0 0
    %110 = vmatpush1.bf16.msra.mxu0 0
    %111 = vmatprep.subr.bf16.mxu0 0
    %112 = vmatpush1.bf16.msra.mxu0 0
    %113 = vmatprep.subr.bf16.mxu0 0
    %114 = vmatpush1.bf16.msra.mxu0 0
    %115 = vmatprep.subr.bf16.mxu0 0
    %116 = vmatpush1.bf16.msra.mxu0 0
    %117 = vmatprep.subr.bf16.mxu0 0
    %118 = vmatpush1.bf16.msra.mxu0 0
    %119 = vmatprep.subr.bf16.mxu0 0
    %120 = vmatpush1.bf16.msra.mxu0 0
    %121 = vmatprep.subr.bf16.mxu0 0
    %122 = vmatpush1.bf16.msra.mxu0 0
    %123 = vmatprep.subr.bf16.mxu0 0
    %124 = vmatpush1.bf16.msra.mxu0 0
    %125 = vmatprep.subr.bf16.mxu0 0
    %126 = vmatpush1.bf16.msra.mxu0 0
    %127 = vmatprep.subr.bf16.mxu0 0
    %128 = vmatpush1.bf16.msra.mxu0 0
    %129 = vmatprep.subr.bf16.mxu0 0
    %130 = vmatpush1.bf16.msra.mxu0 0
    %131 = vmatprep.subr.bf16.mxu0 0
    %132 = vmatpush1.bf16.msra.mxu0 0
    %133 = vmatprep.subr.bf16.mxu0 0
    %134 = vmatpush1.bf16.msra.mxu0 0
    %135 = vmatprep.subr.bf16.mxu0 0
    %136 = vmatpush1.bf16.msra.mxu0 0
    %137 = vmatprep.mubr.bf16.mxu0 0
    %138 = vmatmul.mubr.bf16.gmra.mrb[0].mxu0 %v99
    %v139 = vpop.f32.mrb[0].mxu0
    %v140 = vadd.f32 %v90, %v139
    %v141 = vpop.f32.mrb[0].mxu0
    %v142 = vpop.f32.mrb[0].mxu0
    %v143 = vpop.f32.mrb[0].mxu0
    %144 = vdwg.mxu0
    %v145 = vmax.f32 %v140, 0.0
    %v146 = vpack.c.bf16 %v145, %v145
    %v147 = vld [vmem:[#allocation7] sm:$0xf]
    %v148 = vld [vmem:[#allocation7 + $0x4] sm:$0xf]
    %v149 = vld [vmem:[#allocation7 + $0x8] sm:$0xf]
    %v150 = vld [vmem:[#allocation7 + $0xc] sm:$0xf]
    %v151 = vld [vmem:[#allocation7 + $0x10] sm:$0xf]
    %v152 = vld [vmem:[#allocation7 + $0x14] sm:$0xf]
    %v153 = vld [vmem:[#allocation7 + $0x18] sm:$0xf]
    %v154 = vld [vmem:[#allocation7 + $0x1c] sm:$0xf]
    %v155 = vld [vmem:[#allocation7 + $0x20] sm:$0xf]
    %v156 = vld [vmem:[#allocation7 + $0x24] sm:$0xf]
    %v157 = vld [vmem:[#allocation7 + $0x28] sm:$0xf]
    %v158 = vld [vmem:[#allocation7 + $0x2c] sm:$0xf]
    %v159 = vld [vmem:[#allocation7 + $0x30] sm:$0xf]
    %v160 = vld [vmem:[#allocation7 + $0x34] sm:$0xf]
    %v161 = vld [vmem:[#allocation7 + $0x38] sm:$0xf]
    %v162 = vld [vmem:[#allocation7 + $0x3c] sm:$0xf]
    %v163 = vld [vmem:[%s4] sm:$0x1]
    %v165 = vlaneseq
    %v166 = vshrl.u32 %v165, 7
    %v167 = vsub.s32 0, %v166
    %v168 = vrot.slane %v163, %v167
    %v186 = vunpack.c.l.b16 %v147
    %v187 = vunpack.c.l.b16 %v148
    %v188 = vunpack.c.l.b16 %v149
    %v189 = vunpack.c.l.b16 %v150
    %v190 = vunpack.c.l.b16 %v151
    %v191 = vunpack.c.l.b16 %v152
    %v192 = vunpack.c.l.b16 %v153
    %v193 = vunpack.c.l.b16 %v154
    %v194 = vunpack.c.l.b16 %v155
    %v195 = vunpack.c.l.b16 %v156
    %v196 = vunpack.c.l.b16 %v157
    %v197 = vunpack.c.l.b16 %v158
    %v198 = vunpack.c.l.b16 %v159
    %v199 = vunpack.c.l.b16 %v160
    %v200 = vunpack.c.l.b16 %v161
    %v201 = vunpack.c.l.b16 %v162
    %v202 = vpack.c.b16 %v187, %v186
    %v203 = vpack.c.b16 %v189, %v188
    %v204 = vpack.c.b16 %v191, %v190
    %v205 = vpack.c.b16 %v193, %v192
    %v206 = vpack.c.b16 %v195, %v194
    %v207 = vpack.c.b16 %v197, %v196
    %v208 = vpack.c.b16 %v199, %v198
    %v209 = vpack.c.b16 %v201, %v200
    %218 = vmatprep.subr.bf16.mxu0 0
    %219 = vmatpush1.bf16.msra.mxu0 %v202
    %220 = vmatprep.subr.bf16.mxu0 0
    %221 = vmatpush1.bf16.msra.mxu0 %v203
    %222 = vmatprep.subr.bf16.mxu0 0
    %223 = vmatpush1.bf16.msra.mxu0 %v204
    %224 = vmatprep.subr.bf16.mxu0 0
    %225 = vmatpush1.bf16.msra.mxu0 %v205
    %226 = vmatprep.subr.bf16.mxu0 0
    %227 = vmatpush1.bf16.msra.mxu0 %v206
    %228 = vmatprep.subr.bf16.mxu0 0
    %229 = vmatpush1.bf16.msra.mxu0 %v207
    %230 = vmatprep.subr.bf16.mxu0 0
    %231 = vmatpush1.bf16.msra.mxu0 %v208
    %232 = vmatprep.subr.bf16.mxu0 0
    %233 = vmatpush1.bf16.msra.mxu0 %v209
    %234 = vmatprep.subr.bf16.mxu0 0
    %235 = vmatpush1.bf16.msra.mxu0 0
    %236 = vmatprep.subr.bf16.mxu0 0
    %237 = vmatpush1.bf16.msra.mxu0 0
    %238 = vmatprep.subr.bf16.mxu0 0
    %239 = vmatpush1.bf16.msra.mxu0 0
    %240 = vmatprep.subr.bf16.mxu0 0
    %241 = vmatpush1.bf16.msra.mxu0 0
    %242 = vmatprep.subr.bf16.mxu0 0
    %243 = vmatpush1.bf16.msra.mxu0 0
    %244 = vmatprep.subr.bf16.mxu0 0
    %245 = vmatpush1.bf16.msra.mxu0 0
    %246 = vmatprep.subr.bf16.mxu0 0
    %247 = vmatpush1.bf16.msra.mxu0 0
    %248 = vmatprep.subr.bf16.mxu0 0
    %249 = vmatpush1.bf16.msra.mxu0 0
    %250 = vmatprep.mubr.bf16.mxu0 0
    %251 = vmatmul.mubr.bf16.gmra.mrb[0].mxu0 %v146
    %v252 = vpop.f32.mrb[0].mxu0
    %v253 = vadd.f32 %v168, %v252
    %v254 = vpop.f32.mrb[0].mxu0
    %v255 = vpop.f32.mrb[0].mxu0
    %v256 = vpop.f32.mrb[0].mxu0
    %257 = vdwg.mxu0
    %v258 = vmax.f32 %v253, 0.0
    %v259 = vpack.c.bf16 %v258, %v258
    %v260 = vld [vmem:[#allocation8] sm:$0xf]
    %v261 = vld [vmem:[#allocation8 + $0x4] sm:$0xf]
    %v262 = vld [vmem:[#allocation8 + $0x8] sm:$0xf]
    %v263 = vld [vmem:[#allocation8 + $0xc] sm:$0xf]
    %v264 = vld [vmem:[#allocation8 + $0x10] sm:$0xf]
    %v265 = vld [vmem:[#allocation8 + $0x14] sm:$0xf]
    %v266 = vld [vmem:[#allocation8 + $0x18] sm:$0xf]
    %v267 = vld [vmem:[#allocation8 + $0x1c] sm:$0xf]
    %v268 = vld [vmem:[#allocation8 + $0x20] sm:$0xf]
    %v269 = vld [vmem:[#allocation8 + $0x24] sm:$0xf]
    %v270 = vld [vmem:[#allocation8 + $0x28] sm:$0xf]
    %v271 = vld [vmem:[#allocation8 + $0x2c] sm:$0xf]
    %v272 = vld [vmem:[#allocation8 + $0x30] sm:$0xf]
    %v273 = vld [vmem:[#allocation8 + $0x34] sm:$0xf]
    %v274 = vld [vmem:[#allocation8 + $0x38] sm:$0xf]
    %v275 = vld [vmem:[#allocation8 + $0x3c] sm:$0xf]
    %v276 = vld [vmem:[%s6] sm:$0x1]
    %v278 = vlaneseq
    %v279 = vshrl.u32 %v278, 7
    %v280 = vsub.s32 0, %v279
    %v281 = vrot.slane %v276, %v280
    %v299 = vunpack.c.l.b16 %v260
    %v300 = vunpack.c.l.b16 %v261
    %v301 = vunpack.c.l.b16 %v262
    %v302 = vunpack.c.l.b16 %v263
    %v303 = vunpack.c.l.b16 %v264
    %v304 = vunpack.c.l.b16 %v265
    %v305 = vunpack.c.l.b16 %v266
    %v306 = vunpack.c.l.b16 %v267
    %v307 = vunpack.c.l.b16 %v268
    %v308 = vunpack.c.l.b16 %v269
    %v309 = vunpack.c.l.b16 %v270
    %v310 = vunpack.c.l.b16 %v271
    %v311 = vunpack.c.l.b16 %v272
    %v312 = vunpack.c.l.b16 %v273
    %v313 = vunpack.c.l.b16 %v274
    %v314 = vunpack.c.l.b16 %v275
    %v315 = vpack.c.b16 %v300, %v299
    %v316 = vpack.c.b16 %v302, %v301
    %v317 = vpack.c.b16 %v304, %v303
    %v318 = vpack.c.b16 %v306, %v305
    %v319 = vpack.c.b16 %v308, %v307
    %v320 = vpack.c.b16 %v310, %v309
    %v321 = vpack.c.b16 %v312, %v311
    %v322 = vpack.c.b16 %v314, %v313
    %331 = vmatprep.subr.bf16.mxu0 0
    %332 = vmatpush1.bf16.msra.mxu0 %v315
    %333 = vmatprep.subr.bf16.mxu0 0
    %334 = vmatpush1.bf16.msra.mxu0 %v316
    %335 = vmatprep.subr.bf16.mxu0 0
    %336 = vmatpush1.bf16.msra.mxu0 %v317
    %337 = vmatprep.subr.bf16.mxu0 0
    %338 = vmatpush1.bf16.msra.mxu0 %v318
    %339 = vmatprep.subr.bf16.mxu0 0
    %340 = vmatpush1.bf16.msra.mxu0 %v319
    %341 = vmatprep.subr.bf16.mxu0 0
    %342 = vmatpush1.bf16.msra.mxu0 %v320
    %343 = vmatprep.subr.bf16.mxu0 0
    %344 = vmatpush1.bf16.msra.mxu0 %v321
    %345 = vmatprep.subr.bf16.mxu0 0
    %346 = vmatpush1.bf16.msra.mxu0 %v322
    %347 = vmatprep.subr.bf16.mxu0 0
    %348 = vmatpush1.bf16.msra.mxu0 0
    %349 = vmatprep.subr.bf16.mxu0 0
    %350 = vmatpush1.bf16.msra.mxu0 0
    %351 = vmatprep.subr.bf16.mxu0 0
    %352 = vmatpush1.bf16.msra.mxu0 0
    %353 = vmatprep.subr.bf16.mxu0 0
    %354 = vmatpush1.bf16.msra.mxu0 0
    %355 = vmatprep.subr.bf16.mxu0 0
    %356 = vmatpush1.bf16.msra.mxu0 0
    %357 = vmatprep.subr.bf16.mxu0 0
    %358 = vmatpush1.bf16.msra.mxu0 0
    %359 = vmatprep.subr.bf16.mxu0 0
    %360 = vmatpush1.bf16.msra.mxu0 0
    %361 = vmatprep.subr.bf16.mxu0 0
    %362 = vmatpush1.bf16.msra.mxu0 0
    %363 = vmatprep.mubr.bf16.mxu0 0
    %364 = vmatmul.mubr.bf16.gmra.mrb[0].mxu0 %v259
    %v365 = vpop.f32.mrb[0].mxu0
    %v366 = vadd.f32 %v281, %v365
    %v367 = vpop.f32.mrb[0].mxu0
    %v368 = vpop.f32.mrb[0].mxu0
    %v369 = vpop.f32.mrb[0].mxu0
    %370 = vdwg.mxu0
    %371 = vmax.xlane.f32.xlu0 %v366
    %v372 = vpop.xlane.xlu0 %371
    %v373 = vsub.f32 %v366, %v372
    %v374 = vmul.f32 %v373, 1.442695
    %v375 = vpow.pop %v374
    %376 = vadd.xlane.f32.xlu0 %v375
    %v377 = vpop.xlane.xlu0 %376
    %v378 = vrcp.pop %v377
    %v379 = vmul.f32 1.0, %v378
    %v380 = vmul.f32 %v375, %v379
    %v381 = vpack.c.bf16 %v380, %v380
    %382 = vst [vmem:[#allocation10] sm:$0xf] %v381
    // Predicated region
    $region46: #{tpu_custom_call.1} parent=1 // pred_check
      _
    $region47: #{tpu_custom_call.1} parent=1 // pred_check_branch
      %384 = sbr.rel (0) target = $region49
    $region48: #{tpu_custom_call.1} parent=1 // pred_region
      %s386 = ssub.s32 64, 64
      %387 = vsyncadd [#allocation4], %s386
      %s389 = sshll.u32 [#allocation10], 4
      %s390 = int_to_ptr.vmem [resolvable:$true] %s389
      %392 = dma.vmem_to_hbm [thread:$0]  %s390, 64, %s7, [#allocation4]
    $region49: #{tpu_custom_call.1} parent=1 // pred_fallthru
      _
    // Predicated region
    $region50: #{tpu_custom_call.1} parent=1 // pred_check
      _
    $region51: #{tpu_custom_call.1} parent=1 // pred_check_branch
      %394 = sbr.rel (0) target = $region53
    $region52: #{tpu_custom_call.1} parent=1 // pred_region
      %395 = dma.done [#allocation4], 64
    $region53: #{tpu_custom_call.1} parent=1 // pred_fallthru
      _
    %396 = vsyncpa [#allocation3], 1
    %397 = vsyncpa [#allocation6], 1
    %398 = vsyncpa [#allocation9], 1
    %399 = vsyncpa [#allocation4], 1

</llo_original>
